<compile_context>
chip_gen: v6e
topology: v6e:2x2x1
jax: 0.10.0
libtpu: 0.0.40
codegen_flags: <defaults>
</compile_context>

<pallas_src>
import functools

import jax
import jax.numpy as jnp
from jax.experimental import pallas as pl
from jax.experimental.pallas import tpu as pltpu

LOG2PI = 1.8378770664093453  # log(2*pi)  (cancels between log_q and log_p)


def _ar1_kl_kernel(d, mean_ref, std_ref, eps_ref, alpha_ref, invstd_ref, out_ref):
    """One block of TB batch rows, each row = flattened (T, D) -> (T*D,) lanes."""
    mean = mean_ref[...]        # (TB, L) f32
    std = std_ref[...]          # (TB, L)
    eps = eps_ref[...]          # (TB, L)
    alpha = alpha_ref[...]      # (1, L): 0.0 for t==0 columns, alpha_d otherwise
    inv_std = invstd_ref[...]   # (1, L): exp(-0.5*logpvar_d) at t==0, exp(-0.5*lognvar_d) else

    # posterior reparameterized sample
    sample = mean + std * eps

    # time shift: column (t, d) <- (t-1, d); roll wrap at t==0 is masked by alpha == 0
    prev = pltpu.roll(sample, shift=d, axis=1)

    zp = (sample - alpha * prev) * inv_std

    # log q - log p per element, with the -0.5*log(2*pi) terms cancelled and the
    # constant 0.5*sum(logvar) added back on the host.
    term = 0.5 * (zp * zp - eps * eps) - jnp.log(std)

    # per-block partial sum -> this block's own (1, 1) output tile
    out_ref[...] = jnp.sum(term, keepdims=True)


def _choose_block(b, l):
    """Pick TB rows/block so 3 inputs x 2 pipeline buffers stay ~<= 12 MiB (safe on all gens)."""
    budget = 12 << 20
    rows = max(1, budget // (3 * 2 * l * 4))
    if rows >= b:
        return b, b                     # whole (unpadded) batch in one block
    tb = max(8, (rows // 8) * 8)        # sublane-aligned block height
    b_pad = ((b + tb - 1) // tb) * tb
    return tb, b_pad


def ar1_mvn_kl(post_mean, post_std, eps, logtaus, lognvars):
    """KL(q || AR(1) prior) averaged over batch (== module.forward), via Pallas."""
    B, T, D = post_mean.shape
    L = T * D
    f32 = jnp.float32

    # flatten (T, D) -> lanes (contiguous reshape, no data movement)
    mean2 = jnp.asarray(post_mean, f32).reshape(B, L)
    std2 = jnp.asarray(post_std, f32).reshape(B, L)
    eps2 = jnp.asarray(eps, f32).reshape(B, L)

    logtaus = jnp.asarray(logtaus, f32).reshape(D)
    lognvars = jnp.asarray(lognvars, f32).reshape(D)

    # ---- parameter-only precompute (hoisted out of the per-element kernel path) ----
    alphas = jnp.exp(-1.0 / jnp.exp(logtaus))              # (D,)
    logpvars = lognvars - jnp.log(1.0 - alphas * alphas)   # (D,) log process variance
    alpha_row = jnp.tile(alphas, T).at[:D].set(0.0)        # (L,) zero at t==0 columns
    logvar_row = jnp.tile(lognvars, T).at[:D].set(logpvars)
    invstd_row = jnp.exp(-0.5 * logvar_row)                # (L,)
    logvar_const = 0.5 * jnp.sum(logvar_row)               # per-batch-element constant

    # ---- block the batch axis; pad with zero-contribution rows (mean=0, std=1, eps=0) ----
    tb, b_pad = _choose_block(B, L)
    if b_pad > B:
        pad = b_pad - B
        mean2 = jnp.concatenate([mean2, jnp.zeros((pad, L), f32)], axis=0)
        std2 = jnp.concatenate([std2, jnp.ones((pad, L), f32)], axis=0)
        eps2 = jnp.concatenate([eps2, jnp.zeros((pad, L), f32)], axis=0)
    num_blocks = b_pad // tb

    partials = pl.pallas_call(
        functools.partial(_ar1_kl_kernel, D),
        out_shape=jax.ShapeDtypeStruct((num_blocks, 1, 1), f32),
        grid_spec=pltpu.PrefetchScalarGridSpec(
            num_scalar_prefetch=0,
            grid=(num_blocks,),
            in_specs=[
                pl.BlockSpec((tb, L), lambda i: (i, 0)),   # post_mean rows
                pl.BlockSpec((tb, L), lambda i: (i, 0)),   # post_std rows
                pl.BlockSpec((tb, L), lambda i: (i, 0)),   # eps rows
                pl.BlockSpec((1, L), lambda i: (0, 0)),    # alpha row (t==0 masked)
                pl.BlockSpec((1, L), lambda i: (0, 0)),    # inv-std row
            ],
            out_specs=pl.BlockSpec((pl.Squeezed(), 1, 1), lambda i: (i, 0, 0)),
        ),
        compiler_params=pltpu.CompilerParams(
            dimension_semantics=("parallel",),   # per-block outputs -> safe to parallelize
            vmem_limit_bytes=32 << 20,
        ),
    )(mean2, std2, eps2, alpha_row.reshape(1, L), invstd_row.reshape(1, L))

    # mean over the *real* batch; add back the 0.5*sum(logvar) constant
    return jnp.sum(partials) / B + logvar_const


def _reference_kl(post_mean, post_std, eps, logtaus, lognvars):
    """Pure-JAX mirror of the PyTorch forward (given the same eps draw)."""
    sample = post_mean + post_std * eps
    log_q = jnp.sum(-0.5 * eps ** 2 - jnp.log(post_std) - 0.5 * LOG2PI, axis=(1, 2))
    alpha = jnp.exp(-1.0 / jnp.exp(logtaus))
    logpvar = lognvars - jnp.log(1.0 - alpha ** 2)
    prev = jnp.roll(sample, 1, axis=1)
    means = alpha * prev
    means = means.at[:, 0].set(0.0)
    logvar = jnp.broadcast_to(lognvars, sample.shape)
    logvar = logvar.at[:, 0].set(logpvar)
    log_p_el = -0.5 * ((sample - means) ** 2) / jnp.exp(logvar) - 0.5 * logvar - 0.5 * LOG2PI
    log_p = jnp.sum(log_p_el, axis=(1, 2))
    return jnp.mean(log_q - log_p)


if __name__ == "__main__":
    # small shapes: batch=2, time=8, shape (feature dim)=32
    B, T, D = 2, 8, 32
    tau, nvar = 10.0, 0.1

    key = jax.random.PRNGKey(0)
    k1, k2, k3 = jax.random.split(key, 3)
    post_mean = 0.5 * jax.random.normal(k1, (B, T, D), jnp.float32)
    post_std = jax.nn.softplus(jax.random.normal(k2, (B, T, D), jnp.float32)) + 0.1
    # NOTE: rsample's standard-normal noise is drawn host-side (deterministic key)
    # and fed to the kernel; torch's RNG stream is not reproduced bit-exactly.
    eps = jax.random.normal(k3, (B, T, D), jnp.float32)

    # deterministic parameter init, exactly as the module's __init__
    logtaus = jnp.log(jnp.ones((D,), jnp.float32) * tau)
    lognvars = jnp.log(jnp.ones((D,), jnp.float32) * nvar)

    kl = ar1_mvn_kl(post_mean, post_std, eps, logtaus, lognvars)
    jax.block_until_ready(kl)

    ref = _reference_kl(post_mean, post_std, eps, logtaus, lognvars)
    assert jnp.allclose(kl, ref, rtol=1e-4, atol=1e-4), (float(kl), float(ref))
    print("KERNEL_OK")
</pallas_src>

<mosaic_0001>
module attributes {stable_mosaic.version = 11 : i64} {
  func.func @_ar1_kl_kernel(%arg0: i32, %arg1: memref<2x256xf32, #tpu.memory_space<vmem>>, %arg2: memref<2x256xf32, #tpu.memory_space<vmem>>, %arg3: memref<2x256xf32, #tpu.memory_space<vmem>>, %arg4: memref<1x256xf32, #tpu.memory_space<vmem>>, %arg5: memref<1x256xf32, #tpu.memory_space<vmem>>, %arg6: memref<1x1x1xf32, #tpu.memory_space<vmem>>) attributes {dimension_semantics = [#tpu.dimension_semantics<parallel>], iteration_bounds = array<i64: 1>, scalar_prefetch = 0 : i64, scratch_operands = 0 : i64, tpu.core_type = #tpu.core_type<tc>, window_params = [{transform_indices = @transform_0, window_bounds = array<i64: 2, 256>}, {transform_indices = @transform_1, window_bounds = array<i64: 2, 256>}, {transform_indices = @transform_2, window_bounds = array<i64: 2, 256>}, {pipeline_mode = #tpu.pipeline_mode<synchronous>, transform_indices = @transform_3, window_bounds = array<i64: 1, 256>}, {pipeline_mode = #tpu.pipeline_mode<synchronous>, transform_indices = @transform_4, window_bounds = array<i64: 1, 256>}, {transform_indices = @transform_5, window_bounds = array<i64: 1, 1, 1>}]} {
    %c0 = arith.constant 0 : index
    %c0_0 = arith.constant 0 : index
    %0 = vector.load %arg1[%c0, %c0_0] : memref<2x256xf32, #tpu.memory_space<vmem>>, vector<2x256xf32>
    %c0_1 = arith.constant 0 : index
    %c0_2 = arith.constant 0 : index
    %1 = vector.load %arg2[%c0_1, %c0_2] : memref<2x256xf32, #tpu.memory_space<vmem>>, vector<2x256xf32>
    %c0_3 = arith.constant 0 : index
    %c0_4 = arith.constant 0 : index
    %2 = vector.load %arg3[%c0_3, %c0_4] : memref<2x256xf32, #tpu.memory_space<vmem>>, vector<2x256xf32>
    %c0_5 = arith.constant 0 : index
    %c0_6 = arith.constant 0 : index
    %3 = vector.load %arg4[%c0_5, %c0_6] : memref<1x256xf32, #tpu.memory_space<vmem>>, vector<1x256xf32>
    %c0_7 = arith.constant 0 : index
    %c0_8 = arith.constant 0 : index
    %4 = vector.load %arg5[%c0_7, %c0_8] : memref<1x256xf32, #tpu.memory_space<vmem>>, vector<1x256xf32>
    %5 = arith.mulf %1, %2 : vector<2x256xf32>
    %6 = arith.addf %0, %5 : vector<2x256xf32>
    %c32_i32 = arith.constant 32 : i32
    %7 = tpu.dynamic_rotate %6 by %c32_i32 dim 1 : vector<2x256xf32>, i32 -> vector<2x256xf32>
    %8 = vector.broadcast %3 : vector<1x256xf32> to vector<2x256xf32>
    %9 = arith.mulf %8, %7 : vector<2x256xf32>
    %10 = arith.subf %6, %9 : vector<2x256xf32>
    %11 = vector.broadcast %4 : vector<1x256xf32> to vector<2x256xf32>
    %12 = arith.mulf %10, %11 : vector<2x256xf32>
    %13 = arith.mulf %12, %12 : vector<2x256xf32>
    %14 = arith.mulf %2, %2 : vector<2x256xf32>
    %15 = arith.subf %13, %14 : vector<2x256xf32>
    %cst = arith.constant 5.000000e-01 : f32
    %16 = vector.broadcast %cst : f32 to vector<2x256xf32>
    %17 = arith.mulf %16, %15 : vector<2x256xf32>
    %18 = math.log %1 : vector<2x256xf32>
    %19 = arith.subf %17, %18 : vector<2x256xf32>
    %20 = vector.shape_cast %19 : vector<2x256xf32> to vector<1x2x256xf32>
    %cst_9 = arith.constant dense<0.000000e+00> : vector<1xf32>
    %21 = vector.multi_reduction <add>, %20, %cst_9 [1, 2] : vector<1x2x256xf32> to vector<1xf32>
    %22 = vector.shape_cast %21 : vector<1xf32> to vector<1x1x1xf32>
    %23 = vector.extract %22[0, 0, 0] : f32 from vector<1x1x1xf32>
    %24 = vector.broadcast %23 : f32 to vector<1x1xf32>
    %c0_10 = arith.constant 0 : index
    %c0_11 = arith.constant 0 : index
    %c0_12 = arith.constant 0 : index
    %25 = vector.load %arg6[%c0_10, %c0_11, %c0_12] : memref<1x1x1xf32, #tpu.memory_space<vmem>>, vector<1x1x1xf32>
    %26 = vector.shape_cast %25 : vector<1x1x1xf32> to vector<1x1xf32>
    %27 = vector.shape_cast %24 : vector<1x1xf32> to vector<1x1x1xf32>
    tpu.vector_store %arg6[%c0_10, %c0_11, %c0_12], %27 {strides = array<i32>} : memref<1x1x1xf32, #tpu.memory_space<vmem>>, vector<1x1x1xf32>,
    return
  }
  func.func @transform_0(%arg0: i32) -> (i32, i32) {
    %c0_i32 = arith.constant 0 : i32
    %c0_i32_0 = arith.constant 0 : i32
    return %arg0, %c0_i32 : i32, i32
  }
  func.func @transform_1(%arg0: i32) -> (i32, i32) {
    %c0_i32 = arith.constant 0 : i32
    %c0_i32_0 = arith.constant 0 : i32
    return %arg0, %c0_i32 : i32, i32
  }
  func.func @transform_2(%arg0: i32) -> (i32, i32) {
    %c0_i32 = arith.constant 0 : i32
    %c0_i32_0 = arith.constant 0 : i32
    return %arg0, %c0_i32 : i32, i32
  }
  func.func @transform_3(%arg0: i32) -> (i32, i32) {
    %c0_i32 = arith.constant 0 : i32
    %c0_i32_0 = arith.constant 0 : i32
    %c0_i32_1 = arith.constant 0 : i32
    return %c0_i32, %c0_i32_0 : i32, i32
  }
  func.func @transform_4(%arg0: i32) -> (i32, i32) {
    %c0_i32 = arith.constant 0 : i32
    %c0_i32_0 = arith.constant 0 : i32
    %c0_i32_1 = arith.constant 0 : i32
    return %c0_i32, %c0_i32_0 : i32, i32
  }
  func.func @transform_5(%arg0: i32) -> (i32, i32, i32) {
    %c0_i32 = arith.constant 0 : i32
    %c0_i32_0 = arith.constant 0 : i32
    %c0_i32_1 = arith.constant 0 : i32
    return %arg0, %c0_i32, %c0_i32_0 : i32, i32, i32
  }
}

</mosaic_0001>

<llo_original>
// kernel: tpu_custom_call.1
$region0: #{tpu_custom_call.1}
  #allocation0 [shape = 'u32[]', space=smem, size = 0x4, offset = 0x4, fixed_abs, tag = 'smem constant byte address 0x4 - core index']
  #allocation1 [shape = 'u32[144,128]{1,0:T(1,128)}', space=vmem, size = 0x12000, scoped, tag = 'internal scratch']
  %s0 = inlined_call_operand.hbm [shape: f32[2,256], index: 0, kind: input, shape index: {}]
  %s1 = inlined_call_operand.hbm [shape: f32[2,256], index: 1, kind: input, shape index: {}]
  %s2 = inlined_call_operand.hbm [shape: f32[2,256], index: 2, kind: input, shape index: {}]
  %s3 = inlined_call_operand.vmem [shape: f32[1,256], index: 3, kind: input, shape index: {}]
  %s4 = inlined_call_operand.vmem [shape: f32[1,256], index: 4, kind: input, shape index: {}]
  %s5 = inlined_call_operand.hbm [shape: f32[1,1,1], index: 5, kind: output, shape index: {}]
  %s6 = sld [smem:[#allocation0]]
  $region42: #{tpu_custom_call.1} parent=0
    _
  %s8 = ssub.s32 1, %s6
  %s9 = scalar_select 0, %s8, %s6
  $region1: #{tpu_custom_call.1} parent=0
    #allocation2 [shape = 'u8[2048]{0}', space=vmem, size = 0x800, scoped, tag = 'input window, operand 0, single buffered']
    #allocation3 [shape = 's32[1]{0}', space=sflag, size = 0x4, scoped, tag = 'scoped memory for tpu_custom_call.1']
    #allocation4 [shape = 's32[1]{0}', space=sflag, size = 0x4, scoped, tag = 'scoped memory for tpu_custom_call.1']
    #allocation5 [shape = 'u8[2048]{0}', space=vmem, size = 0x800, scoped, tag = 'input window, operand 1, single buffered']
    #allocation6 [shape = 's32[1]{0}', space=sflag, size = 0x4, scoped, tag = 'scoped memory for tpu_custom_call.1']
    #allocation7 [shape = 'u8[2048]{0}', space=vmem, size = 0x800, scoped, tag = 'input window, operand 2, single buffered']
    #allocation8 [shape = 'u8[512]{0}', space=vmem, size = 0x400, scoped, tag = 'output window, operand 0, single buffered']
    %10 = vsyncpa [#allocation3], 0
    %11 = vsyncpa [#allocation6], 0
    %12 = vsyncpa [#allocation4], 0
    // Predicated region
    $region2: #{tpu_custom_call.1} parent=1 // pred_check
      _
    $region3: #{tpu_custom_call.1} parent=1 // pred_check_branch
      %14 = sbr.rel (0) target = $region5
    $region4: #{tpu_custom_call.1} parent=1 // pred_region
      %s16 = ssub.s32 64, 64
      %17 = vsyncadd [#allocation3], %s16
      %s19 = sshll.u32 [#allocation2], 4
      %s20 = int_to_ptr.vmem [resolvable:$true] %s19
      %22 = dma.hbm_to_vmem [thread:$0]  %s0, 64, %s20, [#allocation3]
    $region5: #{tpu_custom_call.1} parent=1 // pred_fallthru
      _
    // Predicated region
    $region6: #{tpu_custom_call.1} parent=1 // pred_check
      _
    $region7: #{tpu_custom_call.1} parent=1 // pred_check_branch
      %24 = sbr.rel (0) target = $region9
    $region8: #{tpu_custom_call.1} parent=1 // pred_region
      %s26 = ssub.s32 64, 64
      %27 = vsyncadd [#allocation6], %s26
      %s29 = sshll.u32 [#allocation5], 4
      %s30 = int_to_ptr.vmem [resolvable:$true] %s29
      %32 = dma.hbm_to_vmem [thread:$0]  %s1, 64, %s30, [#allocation6]
    $region9: #{tpu_custom_call.1} parent=1 // pred_fallthru
      _
    // Predicated region
    $region10: #{tpu_custom_call.1} parent=1 // pred_check
      _
    $region11: #{tpu_custom_call.1} parent=1 // pred_check_branch
      %34 = sbr.rel (0) target = $region13
    $region12: #{tpu_custom_call.1} parent=1 // pred_region
      %s36 = ssub.s32 64, 64
      %37 = vsyncadd [#allocation6], %s36
      %s39 = sshll.u32 [#allocation7], 4
      %s40 = int_to_ptr.vmem [resolvable:$true] %s39
      %42 = dma.hbm_to_vmem [thread:$0]  %s2, 64, %s40, [#allocation6]
    $region13: #{tpu_custom_call.1} parent=1 // pred_fallthru
      _
    // Predicated region
    $region14: #{tpu_custom_call.1} parent=1 // pred_check
      _
    $region15: #{tpu_custom_call.1} parent=1 // pred_check_branch
      %44 = sbr.rel (0) target = $region17
    $region16: #{tpu_custom_call.1} parent=1 // pred_region
      _
    $region17: #{tpu_custom_call.1} parent=1 // pred_fallthru
      _
    // Predicated region
    $region18: #{tpu_custom_call.1} parent=1 // pred_check
      _
    $region19: #{tpu_custom_call.1} parent=1 // pred_check_branch
      %46 = sbr.rel (0) target = $region21
    $region20: #{tpu_custom_call.1} parent=1 // pred_region
      _
    $region21: #{tpu_custom_call.1} parent=1 // pred_fallthru
      _
    // Predicated region
    $region22: #{tpu_custom_call.1} parent=1 // pred_check
      _
    $region23: #{tpu_custom_call.1} parent=1 // pred_check_branch
      %48 = sbr.rel (0) target = $region25
    $region24: #{tpu_custom_call.1} parent=1 // pred_region
      %49 = dma.done [#allocation3], 64
    $region25: #{tpu_custom_call.1} parent=1 // pred_fallthru
      _
    // Predicated region
    $region26: #{tpu_custom_call.1} parent=1 // pred_check
      _
    $region27: #{tpu_custom_call.1} parent=1 // pred_check_branch
      %51 = sbr.rel (0) target = $region29
    $region28: #{tpu_custom_call.1} parent=1 // pred_region
      %52 = dma.done [#allocation6], 64
    $region29: #{tpu_custom_call.1} parent=1 // pred_fallthru
      _
    // Predicated region
    $region30: #{tpu_custom_call.1} parent=1 // pred_check
      _
    $region31: #{tpu_custom_call.1} parent=1 // pred_check_branch
      %54 = sbr.rel (0) target = $region33
    $region32: #{tpu_custom_call.1} parent=1 // pred_region
      %55 = dma.done [#allocation6], 64
    $region33: #{tpu_custom_call.1} parent=1 // pred_fallthru
      _
    %v56 = vld [vmem:[#allocation2] sm:$0xf]
    %v57 = vld [vmem:[#allocation5] sm:$0xf]
    %v58 = vld [vmem:[#allocation7] sm:$0xf]
    %v59 = vld [vmem:[%s3] sm:$0x3]
    %v60 = vld [vmem:[%s4] sm:$0x3]
    %v61 = vmul.f32 %v57, %v58
    %v62 = vadd.f32 %v56, %v61
    %v65 = vunpack.c.l.s4 1983009808
    %v66 = vunpack.c.0.s8 %v65
    %v67 = vlaneseq
    %v68 = vshrl.u32 %v67, 7
    %v69 = vsub.s32 %v66, %v68
    %v70 = vrot.slane %v62, %v69
    %v71 = vcombine.high %v70, %v70
    %74 = vrot.lane.b32.xlu0 %v70, 32
    %v75 = vpop.permute.xlu0 %74
    %76 = vrot.lane.b32.xlu0 %v71, 32
    %v77 = vpop.permute.xlu0 %76
    %v78 = vlaneseq
    %v79 = vand.u32 %v78, 127
    %vm80 = vcmp.lt.s32.totalorder %v79, 32
    %v81 = vsel %vm80, %v75, %v77
    %v82 = vsel %vm80, %v77, %v75
    %v84 = vlaneseq
    %v85 = vshrl.u32 %v84, 7
    %v86 = vsub.s32 0, %v85
    %v87 = vrot.slane %v59, %v86
    %v88 = vlaneseq
    %v89 = vshrl.u32 %v88, 7
    %v90 = vsub.s32 1, %v89
    %v91 = vrot.slane %v59, %v90
    %v94 = vmul.f32 %v87, %v82
    %v95 = vmul.f32 %v91, %v81
    %v98 = vcombine.low %v94, %v95
    %v100 = vunpack.c.l.s4 1983009808
    %v101 = vunpack.c.0.s8 %v100
    %v102 = vlaneseq
    %v103 = vshrl.u32 %v102, 7
    %v104 = vsub.s32 %v101, %v103
    %v105 = vrot.slane %v98, %v104
    %v107 = vsub.f32 %v62, %v105
    %v109 = vlaneseq
    %v110 = vshrl.u32 %v109, 7
    %v111 = vsub.s32 0, %v110
    %v112 = vrot.slane %v60, %v111
    %v113 = vlaneseq
    %v114 = vshrl.u32 %v113, 7
    %v115 = vsub.s32 1, %v114
    %v116 = vrot.slane %v60, %v115
    %v117 = vcombine.low %v112, %v116
    %v119 = vunpack.c.l.s4 1983009808
    %v120 = vunpack.c.0.s8 %v119
    %v121 = vlaneseq
    %v122 = vshrl.u32 %v121, 7
    %v123 = vsub.s32 %v120, %v122
    %v124 = vrot.slane %v117, %v123
    %v126 = vmul.f32 %v107, %v124
    %v127 = vmul.f32 %v126, %v126
    %v128 = vmul.f32 %v58, %v58
    %v129 = vsub.f32 %v127, %v128
    %v130 = vmul.f32 %v129, 0.5
    %v131 = vlog2.pop %v57
    %v132 = vmul.f32 %v131, 0.6931472
    %v133 = vsub.f32 %v130, %v132
    %v136 = vunpack.c.l.s4 1983009808
    %v137 = vunpack.c.0.s8 %v136
    %v138 = vlaneseq
    %v139 = vshrl.u32 %v138, 7
    %v140 = vsub.s32 %v137, %v139
    %v141 = vrot.slane %v133, %v140
    %v142 = vcombine.high %v141, %v141
    %vm145 = vcmask 1041408
    %v146 = vsel %vm145, %v141, 0.0
    %v147 = vsel %vm145, %v142, 0.0
    %v148 = vadd.f32 %v146, %v147
    %149 = vadd.xlane.f32.xlu0 %v148
    %v150 = vpop.xlane.xlu0 %149
    %v151 = vrot.slane %v150, 4
    %v152 = vadd.f32 %v150, %v151
    %v153 = vrot.slane %v152, 2
    %v154 = vadd.f32 %v152, %v153
    %v155 = vrot.slane %v154, 1
    %v156 = vadd.f32 %v154, %v155
    %s157 = vtos %v156
    %v158 = vstv %s157
    %vm159 = vcmask 0
    %160 = vst.msk [vmem:[#allocation8] sm:$0x1] %vm159, %v158
    // Predicated region
    $region34: #{tpu_custom_call.1} parent=1 // pred_check
      _
    $region35: #{tpu_custom_call.1} parent=1 // pred_check_branch
      %162 = sbr.rel (0) target = $region37
    $region36: #{tpu_custom_call.1} parent=1 // pred_region
      %s164 = ssub.s32 16, 16
      %165 = vsyncadd [#allocation4], %s164
      %s167 = sshll.u32 [#allocation8], 4
      %s168 = int_to_ptr.vmem [resolvable:$true] %s167
      %170 = dma.vmem_to_hbm [thread:$0]  %s168, 16, %s5, [#allocation4]
    $region37: #{tpu_custom_call.1} parent=1 // pred_fallthru
      _
    // Predicated region
    $region38: #{tpu_custom_call.1} parent=1 // pred_check
      _
    $region39: #{tpu_custom_call.1} parent=1 // pred_check_branch
      %172 = sbr.rel (0) target = $region41
    $region40: #{tpu_custom_call.1} parent=1 // pred_region
      %173 = dma.done [#allocation4], 16
    $region41: #{tpu_custom_call.1} parent=1 // pred_fallthru
      _
    %174 = vsyncpa [#allocation3], 1
    %175 = vsyncpa [#allocation6], 1
    %176 = vsyncpa [#allocation4], 1

</llo_original>
